<compile_context>
chip_gen: v6e
topology: v6e:2x2x1
jax: 0.10.0
libtpu: 0.0.40
codegen_flags: <defaults>
</compile_context>

<pallas_src>
import functools

import jax
import jax.numpy as jnp
from jax.experimental import pallas as pl
from jax.experimental.pallas import tpu as pltpu

BN_EPS = 1e-5
_LANE = 128
_SUBLANE = 8
_VMEM_LIMIT = 40 * 1024 * 1024   # leaves headroom inside v7x's 64 MiB VMEM


def _round_up(n, m):
    return (n + m - 1) // m * m


def _pad2(a, rows, cols):
    return jnp.pad(a, ((0, rows - a.shape[0]), (0, cols - a.shape[1])))


# ----------------------------- pass 1: Linear1 + BN1 stats --------------------------------
def _linear1_stats_kernel(x_ref, w1_ref, b1_ref, h_ref, stats_ref, *,
                          valid_rows, block_rows):
    i = pl.program_id(0)
    h = jnp.dot(x_ref[...], w1_ref[...],
                preferred_element_type=jnp.float32) + b1_ref[...]
    h_ref[...] = h

    # Padded batch rows must not pollute BN statistics: mask them out.  The column
    # sums are computed as a thin matmul so they use the MXU slot, not the XLU.
    row = jax.lax.broadcasted_iota(jnp.int32, (1, block_rows), 1) + i * block_rows
    mask = (row < valid_rows).astype(jnp.float32)            # (1, BT)

    @pl.when(i == 0)
    def _():
        stats_ref[...] = jnp.zeros_like(stats_ref)

    stats_ref[0:1, :] += jnp.dot(mask, h, preferred_element_type=jnp.float32)
    stats_ref[1:2, :] += jnp.dot(mask, h * h, preferred_element_type=jnp.float32)


# --------------------- pass 2: BN1 affine + ReLU + Linear2 + BN2 stats --------------------
def _bn_relu_linear2_stats_kernel(h_ref, scale1_ref, shift1_ref, w2_ref, b2_ref,
                                  y_ref, stats_ref, *,
                                  valid_rows, block_rows, matmul_dtype):
    i = pl.program_id(1)                                      # batch axis (inner, "arbitrary")
    a = jnp.maximum(h_ref[...] * scale1_ref[...] + shift1_ref[...], 0.0)
    y = jnp.dot(a.astype(matmul_dtype), w2_ref[...],
                preferred_element_type=jnp.float32) + b2_ref[...]
    y_ref[...] = y

    row = jax.lax.broadcasted_iota(jnp.int32, (1, block_rows), 1) + i * block_rows
    mask = (row < valid_rows).astype(jnp.float32)

    @pl.when(i == 0)
    def _():
        stats_ref[...] = jnp.zeros_like(stats_ref)

    stats_ref[0:1, :] += jnp.dot(mask, y, preferred_element_type=jnp.float32)
    stats_ref[1:2, :] += jnp.dot(mask, y * y, preferred_element_type=jnp.float32)


# ----------------------------- pass 3: BN2 normalize --------------------------------------
def _bn2_kernel(y_ref, scale2_ref, shift2_ref, o_ref):
    o_ref[...] = y_ref[...] * scale2_ref[...] + shift2_ref[...]


def global_embedding(x, w1, b1, gamma1, beta1, w2, b2, *,
                     matmul_dtype=jnp.bfloat16, batch_tile=512):
    """Forward pass of GlobalEmbedding.

    x:                 (B, input_dim) float32
    w1:                (input_dim, hidden_dim)   (transpose of PyTorch's (out, in))
    b1, gamma1, beta1: (1, hidden_dim)
    w2:                (hidden_dim, output_dim)
    b2:                (1, output_dim)
    Returns            (B, output_dim) float32.
    """
    B, d_in = x.shape
    d_h = w1.shape[1]
    d_out = w2.shape[1]
    f32 = jnp.float32

    # Lane-dense padding of every feature axis to a multiple of 128.
    kp = _round_up(d_in, _LANE)
    hp = _round_up(d_h, _LANE)
    op = _round_up(d_out, _LANE)

    # Batch tiling; padded rows are masked out of the BN statistics inside the kernels.
    bt = min(batch_tile, _round_up(B, _SUBLANE))
    b_pad = _round_up(B, bt)
    n_bt = b_pad // bt

    x_p = _pad2(x.astype(f32), b_pad, kp).astype(matmul_dtype)
    w1_p = _pad2(w1.astype(f32), kp, hp).astype(matmul_dtype)
    b1_p = _pad2(b1.astype(f32), 1, hp)
    g1_p = _pad2(gamma1.astype(f32), 1, hp)
    be1_p = _pad2(beta1.astype(f32), 1, hp)
    w2_p = _pad2(w2.astype(f32), hp, op).astype(matmul_dtype)
    b2_p = _pad2(b2.astype(f32), 1, op)

    # ---- pass 1: Linear1 + BN1 statistics -------------------------------------------------
    h_pad, stats1 = pl.pallas_call(
        functools.partial(_linear1_stats_kernel, valid_rows=B, block_rows=bt),
        out_shape=(jax.ShapeDtypeStruct((b_pad, hp), f32),
                   jax.ShapeDtypeStruct((2, hp), f32)),
        grid_spec=pltpu.PrefetchScalarGridSpec(
            num_scalar_prefetch=0,
            grid=(n_bt,),
            in_specs=[pl.BlockSpec((bt, kp), lambda i: (i, 0)),
                      pl.BlockSpec((kp, hp), lambda i: (0, 0)),   # weights stay resident
                      pl.BlockSpec((1, hp), lambda i: (0, 0))],
            out_specs=[pl.BlockSpec((bt, hp), lambda i: (i, 0)),
                       pl.BlockSpec((2, hp), lambda i: (0, 0))]), # accumulator across batch
        compiler_params=pltpu.CompilerParams(
            dimension_semantics=("arbitrary",),
            vmem_limit_bytes=_VMEM_LIMIT),
    )(x_p, w1_p, b1_p)

    inv_b = 1.0 / B
    mean1 = stats1[0:1, :] * inv_b
    var1 = jnp.maximum(stats1[1:2, :] * inv_b - mean1 * mean1, 0.0)
    inv_std1 = jax.lax.rsqrt(var1 + BN_EPS)
    scale1 = g1_p * inv_std1
    shift1 = be1_p - mean1 * scale1

    # ---- pass 2: BN1 affine + ReLU + Linear2 + BN2 statistics -----------------------------
    ot = 256 if (op % 256 == 0) else 128     # output-feature tile: "parallel" axis (2nd TC on v7x)
    n_oc = op // ot
    y_pad, stats2 = pl.pallas_call(
        functools.partial(_bn_relu_linear2_stats_kernel, valid_rows=B,
                          block_rows=bt, matmul_dtype=matmul_dtype),
        out_shape=(jax.ShapeDtypeStruct((b_pad, op), f32),
                   jax.ShapeDtypeStruct((2, op), f32)),
        grid_spec=pltpu.PrefetchScalarGridSpec(
            num_scalar_prefetch=0,
            grid=(n_oc, n_bt),
            in_specs=[pl.BlockSpec((bt, hp), lambda j, i: (i, 0)),
                      pl.BlockSpec((1, hp), lambda j, i: (0, 0)),
                      pl.BlockSpec((1, hp), lambda j, i: (0, 0)),
                      pl.BlockSpec((hp, ot), lambda j, i: (0, j)),
                      pl.BlockSpec((1, ot), lambda j, i: (0, j))],
            out_specs=[pl.BlockSpec((bt, ot), lambda j, i: (i, j)),
                       pl.BlockSpec((2, ot), lambda j, i: (0, j))]),
        compiler_params=pltpu.CompilerParams(
            dimension_semantics=("parallel", "arbitrary"),
            vmem_limit_bytes=_VMEM_LIMIT),
    )(h_pad, scale1, shift1, w2_p, b2_p)

    mean2 = stats2[0:1, :] * inv_b
    var2 = jnp.maximum(stats2[1:2, :] * inv_b - mean2 * mean2, 0.0)
    scale2 = jax.lax.rsqrt(var2 + BN_EPS)
    shift2 = -mean2 * scale2

    # ---- pass 3: BN2 normalize (pure elementwise, batch-parallel) -------------------------
    out_pad = pl.pallas_call(
        _bn2_kernel,
        out_shape=jax.ShapeDtypeStruct((b_pad, op), f32),
        grid_spec=pltpu.PrefetchScalarGridSpec(
            num_scalar_prefetch=0,
            grid=(n_bt,),
            in_specs=[pl.BlockSpec((bt, op), lambda i: (i, 0)),
                      pl.BlockSpec((1, op), lambda i: (0, 0)),
                      pl.BlockSpec((1, op), lambda i: (0, 0))],
            out_specs=pl.BlockSpec((bt, op), lambda i: (i, 0))),
        compiler_params=pltpu.CompilerParams(
            dimension_semantics=("parallel",),
            vmem_limit_bytes=_VMEM_LIMIT),
    )(y_pad, scale2, shift2)

    return out_pad[:B, :d_out]


def reference(x, w1, b1, gamma1, beta1, w2, b2):
    h = x @ w1 + b1
    m = h.mean(0, keepdims=True)
    v = ((h - m) ** 2).mean(0, keepdims=True)
    h = (h - m) / jnp.sqrt(v + BN_EPS) * gamma1 + beta1
    h = jnp.maximum(h, 0.0)
    y = h @ w2 + b2
    m2 = y.mean(0, keepdims=True)
    v2 = ((y - m2) ** 2).mean(0, keepdims=True)
    return (y - m2) / jnp.sqrt(v2 + BN_EPS)


if __name__ == "__main__":
    # Small shapes consistent with the module (input_dim -> hidden_dim -> output_dim).
    # Deliberately not multiples of 8 / 128 to exercise the padding + masking paths.
    B, input_dim, hidden_dim, output_dim = 12, 48, 96, 40

    key = jax.random.PRNGKey(0)
    k_x, k_w1, k_b1, k_w2, k_b2 = jax.random.split(key, 5)

    x = jax.random.normal(k_x, (B, input_dim), dtype=jnp.float32)

    # PyTorch Linear weight is (out, in); we store the transpose so the kernel does x @ W.
    w1 = jax.random.normal(k_w1, (input_dim, hidden_dim), dtype=jnp.float32) * 0.05
    b1 = jax.random.normal(k_b1, (1, hidden_dim), dtype=jnp.float32) * 0.05
    gamma1 = jnp.ones((1, hidden_dim), dtype=jnp.float32)    # BatchNorm1d default init
    beta1 = jnp.zeros((1, hidden_dim), dtype=jnp.float32)
    w2 = jax.random.normal(k_w2, (hidden_dim, output_dim), dtype=jnp.float32) * 0.05
    b2 = jax.random.normal(k_b2, (1, output_dim), dtype=jnp.float32) * 0.05

    ref = reference(x, w1, b1, gamma1, beta1, w2, b2)

    # f32 matmul path: tight correctness check against the pure-JAX reference.
    out_f32 = jax.block_until_ready(
        global_embedding(x, w1, b1, gamma1, beta1, w2, b2, matmul_dtype=jnp.float32))
    assert out_f32.shape == (B, output_dim)
    assert jnp.allclose(out_f32, ref, atol=1e-4, rtol=1e-4)

    # Default fast path: bf16 MXU operands, f32 accumulation and f32 BN/ReLU math.
    out_bf16 = jax.block_until_ready(
        global_embedding(x, w1, b1, gamma1, beta1, w2, b2))
    assert out_bf16.shape == (B, output_dim)
    assert bool(jnp.all(jnp.isfinite(out_bf16)))
    assert float(jnp.max(jnp.abs(out_bf16 - ref))) < 0.5     # bf16 operand rounding slack

    # TODO(synk): eval-mode BatchNorm (running_mean/running_var) is not modeled; this kernel
    # implements the training-mode batch-statistics forward of the PyTorch module.
    print("KERNEL_OK")
</pallas_src>

<mosaic_0001>
module attributes {stable_mosaic.version = 11 : i64} {
  func.func @_linear1_stats_kernel(%arg0: i32, %arg1: memref<16x128xf32, #tpu.memory_space<vmem>>, %arg2: memref<128x128xf32, #tpu.memory_space<vmem>>, %arg3: memref<1x128xf32, #tpu.memory_space<vmem>>, %arg4: memref<16x128xf32, #tpu.memory_space<vmem>>, %arg5: memref<2x128xf32, #tpu.memory_space<vmem>>) attributes {dimension_semantics = [#tpu.dimension_semantics<arbitrary>], iteration_bounds = array<i64: 1>, scalar_prefetch = 0 : i64, scratch_operands = 0 : i64, tpu.core_type = #tpu.core_type<tc>, window_params = [{transform_indices = @transform_0, window_bounds = array<i64: 16, 128>}, {pipeline_mode = #tpu.pipeline_mode<synchronous>, transform_indices = @transform_1, window_bounds = array<i64: 128, 128>}, {pipeline_mode = #tpu.pipeline_mode<synchronous>, transform_indices = @transform_2, window_bounds = array<i64: 1, 128>}, {transform_indices = @transform_3, window_bounds = array<i64: 16, 128>}, {pipeline_mode = #tpu.pipeline_mode<synchronous>, transform_indices = @transform_4, window_bounds = array<i64: 2, 128>}]} {
    %c0 = arith.constant 0 : index
    %c0_0 = arith.constant 0 : index
    %0 = vector.load %arg1[%c0, %c0_0] : memref<16x128xf32, #tpu.memory_space<vmem>>, vector<16x128xf32>
    %c0_1 = arith.constant 0 : index
    %c0_2 = arith.constant 0 : index
    %1 = vector.load %arg2[%c0_1, %c0_2] : memref<128x128xf32, #tpu.memory_space<vmem>>, vector<128x128xf32>
    %cst = arith.constant dense<0.000000e+00> : vector<16x128xf32>
    %2 = tpu.matmul %0, %1, %cst {dimension_numbers = #tpu.dot_dimension_numbers<[1], [0], [0], [1], [0, 0, 1, 1], [], []>} : vector<16x128xf32>, vector<128x128xf32>, vector<16x128xf32> -> vector<16x128xf32>
    %c0_3 = arith.constant 0 : index
    %c0_4 = arith.constant 0 : index
    %3 = vector.load %arg3[%c0_3, %c0_4] : memref<1x128xf32, #tpu.memory_space<vmem>>, vector<1x128xf32>
    %4 = vector.broadcast %3 : vector<1x128xf32> to vector<16x128xf32>
    %5 = arith.addf %2, %4 : vector<16x128xf32>
    %c0_5 = arith.constant 0 : index
    %c0_6 = arith.constant 0 : index
    %6 = vector.load %arg4[%c0_5, %c0_6] : memref<16x128xf32, #tpu.memory_space<vmem>>, vector<16x128xf32>
    tpu.vector_store %arg4[%c0_5, %c0_6], %5 {strides = array<i32>} : memref<16x128xf32, #tpu.memory_space<vmem>>, vector<16x128xf32>,
    %7 = tpu.iota {dimensions = array<i32: 1>} : vector<1x16xi32>
    %c16_i32 = arith.constant 16 : i32
    %8 = arith.muli %arg0, %c16_i32 : i32
    %9 = vector.broadcast %8 : i32 to vector<1x16xi32>
    %10 = arith.addi %7, %9 : vector<1x16xi32>
    %c12_i32 = arith.constant 12 : i32
    %11 = vector.broadcast %c12_i32 : i32 to vector<1x16xi32>
    %12 = arith.cmpi slt, %10, %11 : vector<1x16xi32>
    %13 = arith.extui %12 : vector<1x16xi1> to vector<1x16xi32>
    %14 = arith.sitofp %13 : vector<1x16xi32> to vector<1x16xf32>
    %c0_i32 = arith.constant 0 : i32
    %15 = arith.cmpi eq, %arg0, %c0_i32 : i32
    %16 = arith.extui %15 : i1 to i32
    %c0_i32_7 = arith.constant 0 : i32
    %17 = arith.cmpi ne, %16, %c0_i32_7 : i32
    scf.if %17 {
      %cst_17 = arith.constant 0.000000e+00 : f32
      %27 = vector.broadcast %cst_17 : f32 to vector<2x128xf32>
      %c0_18 = arith.constant 0 : index
      %c0_19 = arith.constant 0 : index
      %28 = vector.load %arg5[%c0_18, %c0_19] : memref<2x128xf32, #tpu.memory_space<vmem>>, vector<2x128xf32>
      tpu.vector_store %arg5[%c0_18, %c0_19], %27 {strides = array<i32>} : memref<2x128xf32, #tpu.memory_space<vmem>>, vector<2x128xf32>,
    } else {
    }
    %c0_8 = arith.constant 0 : index
    %c0_9 = arith.constant 0 : index
    %18 = vector.load %arg5[%c0_8, %c0_9] : memref<2x128xf32, #tpu.memory_space<vmem>>, vector<1x128xf32>
    %cst_10 = arith.constant dense<0.000000e+00> : vector<1x128xf32>
    %19 = tpu.matmul %14, %5, %cst_10 {dimension_numbers = #tpu.dot_dimension_numbers<[1], [0], [0], [1], [0, 0, 1, 1], [], []>} : vector<1x16xf32>, vector<16x128xf32>, vector<1x128xf32> -> vector<1x128xf32>
    %20 = arith.addf %18, %19 : vector<1x128xf32>
    %c0_11 = arith.constant 0 : index
    %c0_12 = arith.constant 0 : index
    %21 = vector.load %arg5[%c0_11, %c0_12] : memref<2x128xf32, #tpu.memory_space<vmem>>, vector<1x128xf32>
    tpu.vector_store %arg5[%c0_11, %c0_12], %20 {strides = array<i32>} : memref<2x128xf32, #tpu.memory_space<vmem>>, vector<1x128xf32>,
    %c1 = arith.constant 1 : index
    %c0_13 = arith.constant 0 : index
    %22 = vector.load %arg5[%c1, %c0_13] : memref<2x128xf32, #tpu.memory_space<vmem>>, vector<1x128xf32>
    %23 = arith.mulf %5, %5 : vector<16x128xf32>
    %cst_14 = arith.constant dense<0.000000e+00> : vector<1x128xf32>
    %24 = tpu.matmul %14, %23, %cst_14 {dimension_numbers = #tpu.dot_dimension_numbers<[1], [0], [0], [1], [0, 0, 1, 1], [], []>} : vector<1x16xf32>, vector<16x128xf32>, vector<1x128xf32> -> vector<1x128xf32>
    %25 = arith.addf %22, %24 : vector<1x128xf32>
    %c1_15 = arith.constant 1 : index
    %c0_16 = arith.constant 0 : index
    %26 = vector.load %arg5[%c1_15, %c0_16] : memref<2x128xf32, #tpu.memory_space<vmem>>, vector<1x128xf32>
    tpu.vector_store %arg5[%c1_15, %c0_16], %25 {strides = array<i32>} : memref<2x128xf32, #tpu.memory_space<vmem>>, vector<1x128xf32>,
    return
  }
  func.func @transform_0(%arg0: i32) -> (i32, i32) {
    %c0_i32 = arith.constant 0 : i32
    %c0_i32_0 = arith.constant 0 : i32
    return %arg0, %c0_i32 : i32, i32
  }
  func.func @transform_1(%arg0: i32) -> (i32, i32) {
    %c0_i32 = arith.constant 0 : i32
    %c0_i32_0 = arith.constant 0 : i32
    %c0_i32_1 = arith.constant 0 : i32
    return %c0_i32, %c0_i32_0 : i32, i32
  }
  func.func @transform_2(%arg0: i32) -> (i32, i32) {
    %c0_i32 = arith.constant 0 : i32
    %c0_i32_0 = arith.constant 0 : i32
    %c0_i32_1 = arith.constant 0 : i32
    return %c0_i32, %c0_i32_0 : i32, i32
  }
  func.func @transform_3(%arg0: i32) -> (i32, i32) {
    %c0_i32 = arith.constant 0 : i32
    %c0_i32_0 = arith.constant 0 : i32
    return %arg0, %c0_i32 : i32, i32
  }
  func.func @transform_4(%arg0: i32) -> (i32, i32) {
    %c0_i32 = arith.constant 0 : i32
    %c0_i32_0 = arith.constant 0 : i32
    %c0_i32_1 = arith.constant 0 : i32
    return %c0_i32, %c0_i32_0 : i32, i32
  }
}

</mosaic_0001>

<llo_original>
// kernel: tpu_custom_call.1
$region0: #{tpu_custom_call.1}
  #allocation0 [shape = 'u32[]', space=smem, size = 0x4, offset = 0x4, fixed_abs, tag = 'smem constant byte address 0x4 - core index']
  #allocation1 [shape = 'u32[144,128]{1,0:T(1,128)}', space=vmem, size = 0x12000, scoped, tag = 'internal scratch']
  %s0 = inlined_call_operand.hbm [shape: f32[16,128], index: 0, kind: input, shape index: {}]
  %s1 = inlined_call_operand.hbm [shape: f32[128,128], index: 1, kind: input, shape index: {}]
  %s2 = inlined_call_operand.vmem [shape: f32[1,128], index: 2, kind: input, shape index: {}]
  %s3 = inlined_call_operand.hbm [shape: f32[16,128], index: 3, kind: output, shape index: {0}]
  %s4 = inlined_call_operand.hbm [shape: f32[2,128], index: 4, kind: output, shape index: {1}]
  %5 = xla_tuple %s3, %s4
  %s6 = sld [smem:[#allocation0]]
  $region42: #{tpu_custom_call.1} parent=0
    _
  %s8 = ssub.s32 1, %s6
  %s9 = scalar_select 0, %s8, %s6
  $region1: #{tpu_custom_call.1} parent=0
    #allocation2 [shape = 'u8[8192]{0}', space=vmem, size = 0x2000, scoped, tag = 'input window, operand 0, single buffered']
    #allocation3 [shape = 's32[1]{0}', space=sflag, size = 0x4, scoped, tag = 'scoped memory for tpu_custom_call.1']
    #allocation4 [shape = 's32[1]{0}', space=sflag, size = 0x4, scoped, tag = 'scoped memory for tpu_custom_call.1']
    #allocation5 [shape = 'u8[65536]{0}', space=vmem, size = 0x10000, scoped, tag = 'input window, operand 1, single buffered']
    #allocation6 [shape = 's32[1]{0}', space=sflag, size = 0x4, scoped, tag = 'scoped memory for tpu_custom_call.1']
    #allocation7 [shape = 'u8[8192]{0}', space=vmem, size = 0x2000, scoped, tag = 'output window, operand 0, single buffered']
    #allocation8 [shape = 'u8[1024]{0}', space=vmem, size = 0x400, scoped, tag = 'output window, operand 1, single buffered']
    #allocation9 [shape = 's32[1]{0}', space=sflag, size = 0x4, scoped, tag = 'scoped memory for tpu_custom_call.1']
    %10 = vsyncpa [#allocation3], 0
    %11 = vsyncpa [#allocation6], 0
    %12 = vsyncpa [#allocation4], 0
    %13 = vsyncpa [#allocation9], 0
    // Predicated region
    $region2: #{tpu_custom_call.1} parent=1 // pred_check
      _
    $region3: #{tpu_custom_call.1} parent=1 // pred_check_branch
      %15 = sbr.rel (0) target = $region5
    $region4: #{tpu_custom_call.1} parent=1 // pred_region
      %s17 = ssub.s32 256, 256
      %18 = vsyncadd [#allocation3], %s17
      %s19 = sshll.u32 [#allocation2], 4
      %s20 = int_to_ptr.vmem [resolvable:$true] %s19
      %25 = dma.hbm_to_vmem [thread:$0]  %s0, 256, %s20, [#allocation3], 128, 128, 8
    $region5: #{tpu_custom_call.1} parent=1 // pred_fallthru
      _
    // Predicated region
    $region6: #{tpu_custom_call.1} parent=1 // pred_check
      _
    $region7: #{tpu_custom_call.1} parent=1 // pred_check_branch
      %27 = sbr.rel (0) target = $region9
    $region8: #{tpu_custom_call.1} parent=1 // pred_region
      %s29 = ssub.s32 2048, 2048
      %30 = vsyncadd [#allocation6], %s29
      %s31 = sshll.u32 [#allocation5], 4
      %s32 = int_to_ptr.vmem [resolvable:$true] %s31
      %37 = dma.hbm_to_vmem [thread:$0]  %s1, 2048, %s32, [#allocation6], 128, 128, 8
    $region9: #{tpu_custom_call.1} parent=1 // pred_fallthru
      _
    // Predicated region
    $region10: #{tpu_custom_call.1} parent=1 // pred_check
      _
    $region11: #{tpu_custom_call.1} parent=1 // pred_check_branch
      %39 = sbr.rel (0) target = $region13
    $region12: #{tpu_custom_call.1} parent=1 // pred_region
      _
    $region13: #{tpu_custom_call.1} parent=1 // pred_fallthru
      _
    // Predicated region
    $region14: #{tpu_custom_call.1} parent=1 // pred_check
      _
    $region15: #{tpu_custom_call.1} parent=1 // pred_check_branch
      %41 = sbr.rel (0) target = $region17
    $region16: #{tpu_custom_call.1} parent=1 // pred_region
      %42 = dma.done [#allocation3], 256
    $region17: #{tpu_custom_call.1} parent=1 // pred_fallthru
      _
    // Predicated region
    $region18: #{tpu_custom_call.1} parent=1 // pred_check
      _
    $region19: #{tpu_custom_call.1} parent=1 // pred_check_branch
      %44 = sbr.rel (0) target = $region21
    $region20: #{tpu_custom_call.1} parent=1 // pred_region
      %45 = dma.done [#allocation6], 2048
    $region21: #{tpu_custom_call.1} parent=1 // pred_fallthru
      _
    %v46 = vld [vmem:[#allocation2] sm:$0xff]
    %v47 = vld [vmem:[#allocation2 + $0x8] sm:$0xff]
    %v48 = vld [vmem:[#allocation5] sm:$0xff]
    %v49 = vld [vmem:[#allocation5 + $0x8] sm:$0xff]
    %v50 = vld [vmem:[#allocation5 + $0x10] sm:$0xff]
    %v51 = vld [vmem:[#allocation5 + $0x18] sm:$0xff]
    %v52 = vld [vmem:[#allocation5 + $0x20] sm:$0xff]
    %v53 = vld [vmem:[#allocation5 + $0x28] sm:$0xff]
    %v54 = vld [vmem:[#allocation5 + $0x30] sm:$0xff]
    %v55 = vld [vmem:[#allocation5 + $0x38] sm:$0xff]
    %v56 = vld [vmem:[#allocation5 + $0x40] sm:$0xff]
    %v57 = vld [vmem:[#allocation5 + $0x48] sm:$0xff]
    %v58 = vld [vmem:[#allocation5 + $0x50] sm:$0xff]
    %v59 = vld [vmem:[#allocation5 + $0x58] sm:$0xff]
    %v60 = vld [vmem:[#allocation5 + $0x60] sm:$0xff]
    %v61 = vld [vmem:[#allocation5 + $0x68] sm:$0xff]
    %v62 = vld [vmem:[#allocation5 + $0x70] sm:$0xff]
    %v63 = vld [vmem:[#allocation5 + $0x78] sm:$0xff]
    %v64 = vld [vmem:[%s2] sm:$0x1]
    %v66 = vlaneseq
    %v67 = vshrl.u32 %v66, 7
    %v68 = vsub.s32 0, %v67
    %v69 = vrot.slane %v64, %v68
    %71 = vmatprep.subr.mxu0 0.0
    %72 = vmatpush1.msra.mxu0 %v63
    %73 = vmatprep.subr.mxu0 0.0
    %74 = vmatpush1.msra.mxu0 %v62
    %75 = vmatprep.subr.mxu0 0.0
    %76 = vmatpush1.msra.mxu0 %v61
    %77 = vmatprep.subr.mxu0 0.0
    %78 = vmatpush1.msra.mxu0 %v60
    %79 = vmatprep.subr.mxu0 0.0
    %80 = vmatpush1.msra.mxu0 %v59
    %81 = vmatprep.subr.mxu0 0.0
    %82 = vmatpush1.msra.mxu0 %v58
    %83 = vmatprep.subr.mxu0 0.0
    %84 = vmatpush1.msra.mxu0 %v57
    %85 = vmatprep.subr.mxu0 0.0
    %86 = vmatpush1.msra.mxu0 %v56
    %87 = vmatprep.subr.mxu0 0.0
    %88 = vmatpush1.msra.mxu0 %v55
    %89 = vmatprep.subr.mxu0 0.0
    %90 = vmatpush1.msra.mxu0 %v54
    %91 = vmatprep.subr.mxu0 0.0
    %92 = vmatpush1.msra.mxu0 %v53
    %93 = vmatprep.subr.mxu0 0.0
    %94 = vmatpush1.msra.mxu0 %v52
    %95 = vmatprep.subr.mxu0 0.0
    %96 = vmatpush1.msra.mxu0 %v51
    %97 = vmatprep.subr.mxu0 0.0
    %98 = vmatpush1.msra.mxu0 %v50
    %99 = vmatprep.subr.mxu0 0.0
    %100 = vmatpush1.msra.mxu0 %v49
    %101 = vmatprep.subr.mxu0 0.0
    %102 = vmatpush1.msra.mxu0 %v48
    %103 = vmatprep.subr.mxu0 0.0
    %104 = vmatpush2.msra.mxu0 0.0
    %105 = vmatprep.subr.mxu0 0.0
    %106 = vmatpush2.msra.mxu0 0.0
    %107 = vmatprep.subr.mxu0 0.0
    %108 = vmatpush2.msra.mxu0 0.0
    %109 = vmatprep.subr.mxu0 0.0
    %110 = vmatpush2.msra.mxu0 0.0
    %111 = vmatprep.subr.mxu0 0.0
    %112 = vmatpush2.msra.mxu0 0.0
    %113 = vmatprep.subr.mxu0 0.0
    %114 = vmatpush2.msra.mxu0 0.0
    %115 = vmatprep.subr.mxu0 0.0
    %116 = vmatpush2.msra.mxu0 0.0
    %117 = vmatprep.subr.mxu0 0.0
    %118 = vmatpush2.msra.mxu0 0.0
    %119 = vmatprep.subr.mxu0 0.0
    %120 = vmatpush2.msra.mxu0 0.0
    %121 = vmatprep.subr.mxu0 0.0
    %122 = vmatpush2.msra.mxu0 0.0
    %123 = vmatprep.subr.mxu0 0.0
    %124 = vmatpush2.msra.mxu0 0.0
    %125 = vmatprep.subr.mxu0 0.0
    %126 = vmatpush2.msra.mxu0 0.0
    %127 = vmatprep.subr.mxu0 0.0
    %128 = vmatpush2.msra.mxu0 0.0
    %129 = vmatprep.subr.mxu0 0.0
    %130 = vmatpush2.msra.mxu0 0.0
    %131 = vmatprep.subr.mxu0 0.0
    %132 = vmatpush2.msra.mxu0 0.0
    %133 = vmatprep.subr.mxu0 0.0
    %134 = vmatpush2.msra.mxu0 0.0
    %135 = vmatprep.mubr.f32.mxu0 0.0
    %136 = vmatmul.mubr.f32.gmra.mxu0 %v46
    %v137 = vpop.f32.mrf.mxu0
    %v138 = vadd.f32 %v69, %v137
    %v139 = vpop.f32.mrf.mxu0
    %140 = vmatprep.mubr.f32.mxu0 0.0
    %141 = vmatmul.mubr.f32.gmra.mxu0 %v47
    %v142 = vpop.f32.mrf.mxu0
    %v143 = vadd.f32 %v69, %v142
    %v144 = vpop.f32.mrf.mxu0
    %145 = vdwg.mxu0
    %146 = vst [vmem:[#allocation7] sm:$0xff] %v138
    %147 = vst [vmem:[#allocation7 + $0x8] sm:$0xff] %v143
    %v148 = vlaneseq
    %v149 = vand.u32 %v148, 127
    %s150 = smul.u32 0, 16
    %v151 = vstv %s150
    %v152 = vadd.s32 %v149, %v151
    %vm153 = vcmp.lt.s32.totalorder %v152, 12
    %v154 = vsel %vm153, 1, 0
    %v155 = vcvt.s32.f32 %v154
    %p156 = scmp.eq.s32.totalorder 0, 0
    // Predicated region
    $region22: #{tpu_custom_call.1} parent=1 // pred_check
      %p157 = pneg %p156
    $region23: #{tpu_custom_call.1} parent=1 // pred_check_branch
      %159 = sbr.rel (%p157) target = $region25
    $region24: #{tpu_custom_call.1} parent=1 // pred_region
      %160 = vst [vmem:[#allocation8] sm:$0x3] 0.0
    $region25: #{tpu_custom_call.1} parent=1 // pred_fallthru
      _
    %v161 = vld [vmem:[#allocation8] sm:$0x1]
    %vm162 = vcmask 130048
    %v164 = vsel %vm162, %v155, 0
    %166 = vmatprep.subr.mxu0 0.0
    %167 = vmatpush1.msra.mxu0 0.0
    %168 = vmatprep.subr.mxu0 0.0
    %169 = vmatpush1.msra.mxu0 0.0
    %170 = vmatprep.subr.mxu0 0.0
    %171 = vmatpush1.msra.mxu0 0.0
    %172 = vmatprep.subr.mxu0 0.0
    %173 = vmatpush1.msra.mxu0 0.0
    %174 = vmatprep.subr.mxu0 0.0
    %175 = vmatpush1.msra.mxu0 0.0
    %176 = vmatprep.subr.mxu0 0.0
    %177 = vmatpush1.msra.mxu0 0.0
    %178 = vmatprep.subr.mxu0 0.0
    %179 = vmatpush1.msra.mxu0 0.0
    %180 = vmatprep.subr.mxu0 0.0
    %181 = vmatpush1.msra.mxu0 0.0
    %182 = vmatprep.subr.mxu0 0.0
    %183 = vmatpush1.msra.mxu0 0.0
    %184 = vmatprep.subr.mxu0 0.0
    %185 = vmatpush1.msra.mxu0 0.0
    %186 = vmatprep.subr.mxu0 0.0
    %187 = vmatpush1.msra.mxu0 0.0
    %188 = vmatprep.subr.mxu0 0.0
    %189 = vmatpush1.msra.mxu0 0.0
    %190 = vmatprep.subr.mxu0 0.0
    %191 = vmatpush1.msra.mxu0 0.0
    %192 = vmatprep.subr.mxu0 0.0
    %193 = vmatpush1.msra.mxu0 0.0
    %194 = vmatprep.subr.mxu0 0.0
    %195 = vmatpush1.msra.mxu0 %v143
    %196 = vmatprep.subr.mxu0 0.0
    %197 = vmatpush1.msra.mxu0 %v138
    %198 = vmatprep.subr.mxu0 0.0
    %199 = vmatpush2.msra.mxu0 0.0
    %200 = vmatprep.subr.mxu0 0.0
    %201 = vmatpush2.msra.mxu0 0.0
    %202 = vmatprep.subr.mxu0 0.0
    %203 = vmatpush2.msra.mxu0 0.0
    %204 = vmatprep.subr.mxu0 0.0
    %205 = vmatpush2.msra.mxu0 0.0
    %206 = vmatprep.subr.mxu0 0.0
    %207 = vmatpush2.msra.mxu0 0.0
    %208 = vmatprep.subr.mxu0 0.0
    %209 = vmatpush2.msra.mxu0 0.0
    %210 = vmatprep.subr.mxu0 0.0
    %211 = vmatpush2.msra.mxu0 0.0
    %212 = vmatprep.subr.mxu0 0.0
    %213 = vmatpush2.msra.mxu0 0.0
    %214 = vmatprep.subr.mxu0 0.0
    %215 = vmatpush2.msra.mxu0 0.0
    %216 = vmatprep.subr.mxu0 0.0
    %217 = vmatpush2.msra.mxu0 0.0
    %218 = vmatprep.subr.mxu0 0.0
    %219 = vmatpush2.msra.mxu0 0.0
    %220 = vmatprep.subr.mxu0 0.0
    %221 = vmatpush2.msra.mxu0 0.0
    %222 = vmatprep.subr.mxu0 0.0
    %223 = vmatpush2.msra.mxu0 0.0
    %224 = vmatprep.subr.mxu0 0.0
    %225 = vmatpush2.msra.mxu0 0.0
    %226 = vmatprep.subr.mxu0 0.0
    %227 = vmatpush2.msra.mxu0 0.0
    %228 = vmatprep.subr.mxu0 0.0
    %229 = vmatpush2.msra.mxu0 0.0
    %230 = vmatprep.mubr.f32.mxu0 0.0
    %231 = vmatmul.mubr.f32.gmra.mxu0 %v164
    %v232 = vpop.f32.mrf.mxu0
    %v233 = vadd.f32 0.0, %v232
    %v234 = vpop.f32.mrf.mxu0
    %235 = vdwg.mxu0
    %v236 = vadd.f32 %v161, %v233
    %237 = vst [vmem:[#allocation8] sm:$0x1] %v236
    %v238 = vld [vmem:[#allocation8 + $0x1] sm:$0x1]
    %v239 = vmul.f32 %v138, %v138
    %v240 = vmul.f32 %v143, %v143
    %241 = vmatprep.subr.mxu0 0.0
    %242 = vmatpush1.msra.mxu0 0.0
    %243 = vmatprep.subr.mxu0 0.0
    %244 = vmatpush1.msra.mxu0 0.0
    %245 = vmatprep.subr.mxu0 0.0
    %246 = vmatpush1.msra.mxu0 0.0
    %247 = vmatprep.subr.mxu0 0.0
    %248 = vmatpush1.msra.mxu0 0.0
    %249 = vmatprep.subr.mxu0 0.0
    %250 = vmatpush1.msra.mxu0 0.0
    %251 = vmatprep.subr.mxu0 0.0
    %252 = vmatpush1.msra.mxu0 0.0
    %253 = vmatprep.subr.mxu0 0.0
    %254 = vmatpush1.msra.mxu0 0.0
    %255 = vmatprep.subr.mxu0 0.0
    %256 = vmatpush1.msra.mxu0 0.0
    %257 = vmatprep.subr.mxu0 0.0
    %258 = vmatpush1.msra.mxu0 0.0
    %259 = vmatprep.subr.mxu0 0.0
    %260 = vmatpush1.msra.mxu0 0.0
    %261 = vmatprep.subr.mxu0 0.0
    %262 = vmatpush1.msra.mxu0 0.0
    %263 = vmatprep.subr.mxu0 0.0
    %264 = vmatpush1.msra.mxu0 0.0
    %265 = vmatprep.subr.mxu0 0.0
    %266 = vmatpush1.msra.mxu0 0.0
    %267 = vmatprep.subr.mxu0 0.0
    %268 = vmatpush1.msra.mxu0 0.0
    %269 = vmatprep.subr.mxu0 0.0
    %270 = vmatpush1.msra.mxu0 %v240
    %271 = vmatprep.subr.mxu0 0.0
    %272 = vmatpush1.msra.mxu0 %v239
    %273 = vmatprep.subr.mxu0 0.0
    %274 = vmatpush2.msra.mxu0 0.0
    %275 = vmatprep.subr.mxu0 0.0
    %276 = vmatpush2.msra.mxu0 0.0
    %277 = vmatprep.subr.mxu0 0.0
    %278 = vmatpush2.msra.mxu0 0.0
    %279 = vmatprep.subr.mxu0 0.0
    %280 = vmatpush2.msra.mxu0 0.0
    %281 = vmatprep.subr.mxu0 0.0
    %282 = vmatpush2.msra.mxu0 0.0
    %283 = vmatprep.subr.mxu0 0.0
    %284 = vmatpush2.msra.mxu0 0.0
    %285 = vmatprep.subr.mxu0 0.0
    %286 = vmatpush2.msra.mxu0 0.0
    %287 = vmatprep.subr.mxu0 0.0
    %288 = vmatpush2.msra.mxu0 0.0
    %289 = vmatprep.subr.mxu0 0.0
    %290 = vmatpush2.msra.mxu0 0.0
    %291 = vmatprep.subr.mxu0 0.0
    %292 = vmatpush2.msra.mxu0 0.0
    %293 = vmatprep.subr.mxu0 0.0
    %294 = vmatpush2.msra.mxu0 0.0
    %295 = vmatprep.subr.mxu0 0.0
    %296 = vmatpush2.msra.mxu0 0.0
    %297 = vmatprep.subr.mxu0 0.0
    %298 = vmatpush2.msra.mxu0 0.0
    %299 = vmatprep.subr.mxu0 0.0
    %300 = vmatpush2.msra.mxu0 0.0
    %301 = vmatprep.subr.mxu0 0.0
    %302 = vmatpush2.msra.mxu0 0.0
    %303 = vmatprep.subr.mxu0 0.0
    %304 = vmatpush2.msra.mxu0 0.0
    %305 = vmatprep.mubr.f32.mxu0 0.0
    %306 = vmatmul.mubr.f32.gmra.mxu0 %v164
    %v307 = vpop.f32.mrf.mxu0
    %v308 = vadd.f32 0.0, %v307
    %v309 = vpop.f32.mrf.mxu0
    %310 = vdwg.mxu0
    %v311 = vadd.f32 %v238, %v308
    %312 = vst [vmem:[#allocation8 + $0x1] sm:$0x1] %v311
    // Predicated region
    $region26: #{tpu_custom_call.1} parent=1 // pred_check
      _
    $region27: #{tpu_custom_call.1} parent=1 // pred_check_branch
      %314 = sbr.rel (0) target = $region29
    $region28: #{tpu_custom_call.1} parent=1 // pred_region
      %s316 = ssub.s32 256, 256
      %317 = vsyncadd [#allocation4], %s316
      %s318 = sshll.u32 [#allocation7], 4
      %s319 = int_to_ptr.vmem [resolvable:$true] %s318
      %324 = dma.vmem_to_hbm [thread:$0]  %s319, 256, %s3, [#allocation4], 128, 128, 8
    $region29: #{tpu_custom_call.1} parent=1 // pred_fallthru
      _
    // Predicated region
    $region30: #{tpu_custom_call.1} parent=1 // pred_check
      _
    $region31: #{tpu_custom_call.1} parent=1 // pred_check_branch
      %326 = sbr.rel (0) target = $region33
    $region32: #{tpu_custom_call.1} parent=1 // pred_region
      %s328 = ssub.s32 32, 32
      %329 = vsyncadd [#allocation9], %s328
      %s331 = sshll.u32 [#allocation8], 4
      %s332 = int_to_ptr.vmem [resolvable:$true] %s331
      %334 = dma.vmem_to_hbm [thread:$0]  %s332, 32, %s4, [#allocation9]
    $region33: #{tpu_custom_call.1} parent=1 // pred_fallthru
      _
    // Predicated region
    $region34: #{tpu_custom_call.1} parent=1 // pred_check
      _
    $region35: #{tpu_custom_call.1} parent=1 // pred_check_branch
      %336 = sbr.rel (0) target = $region37
    $region36: #{tpu_custom_call.1} parent=1 // pred_region
      %337 = dma.done [#allocation4], 256
    $region37: #{tpu_custom_call.1} parent=1 // pred_fallthru
      _
    // Predicated region
    $region38: #{tpu_custom_call.1} parent=1 // pred_check
      _
    $region39: #{tpu_custom_call.1} parent=1 // pred_check_branch
      %339 = sbr.rel (0) target = $region41
    $region40: #{tpu_custom_call.1} parent=1 // pred_region
      %340 = dma.done [#allocation9], 32
    $region41: #{tpu_custom_call.1} parent=1 // pred_fallthru
      _
    %341 = vsyncpa [#allocation3], 1
    %342 = vsyncpa [#allocation6], 1
    %343 = vsyncpa [#allocation4], 1
    %344 = vsyncpa [#allocation9], 1

</llo_original>
